<compile_context>
chip_gen: v5e
topology: v5e:2x2
jax: 0.10.0
libtpu: 0.0.40
codegen_flags: <defaults>
</compile_context>

<pallas_src>
import numpy as np
import jax
import jax.numpy as jnp
from jax.experimental import pallas as pl
from jax.experimental.pallas import tpu as pltpu

_LANE = 128
_MAX_SUBLANE_ROWS = 1024   # 3ch * 1024 * 128 * 4B = 1.5 MiB per block buffer


def _hue_kernel(factor_ref, x_ref, o_ref):
    """Hue shift on a (1, 3, TS, 128) block; factor_ref is a (1,) f32 in SMEM."""
    factor = factor_ref[0]

    r = x_ref[0, 0, :, :].astype(jnp.float32)
    g = x_ref[0, 1, :, :].astype(jnp.float32)
    b = x_ref[0, 2, :, :].astype(jnp.float32)

    maxc = jnp.maximum(jnp.maximum(r, g), b)          # v
    minc = jnp.minimum(jnp.minimum(r, g), b)
    cr = maxc - minc                                  # chroma == v * s
    eqc = maxc == minc
    safe_cr = jnp.where(eqc, jnp.float32(1.0), cr)

    # One EUP reciprocal instead of three VPU divides.  Two Newton steps push
    # the relative error to ~2^-30 so results match the divide-based reference
    # well within image precision.
    inv_cr = pl.reciprocal(safe_cr, approx=True)
    inv_cr = inv_cr * (2.0 - safe_cr * inv_cr)
    inv_cr = inv_cr * (2.0 - safe_cr * inv_cr)

    # Hue numerator in [-1, 5]: nested select with the same mask priority as
    # torchvision's hr+hg+hb (R-max, else G-max, else B-max).  Note
    # bc-gc == (g-b)/cr etc., so only the pairwise differences are needed.
    is_r = maxc == r
    is_g = maxc == g
    h_num = jnp.where(
        is_r, (g - b) * inv_cr,
        jnp.where(is_g, 2.0 + (b - r) * inv_cr, 4.0 + (r - g) * inv_cr))

    h = h_num * (1.0 / 6.0) + 1.0
    h = h - jnp.floor(h)            # fmod(., 1): argument is >= 0
    h = h + factor                  # hue shift (scalar from SMEM)
    h = h - jnp.floor(h)            # (h + factor) mod 1

    # HSV -> RGB, arithmetic sextant form (continuous; no floor / select chain).
    # Each channel is stored as soon as it is computed to keep the live set
    # small (only maxc, cr, h6 stay live across channels).
    h6 = h * 6.0
    for ch, n in enumerate((5.0, 3.0, 1.0)):          # R, G, B
        k = n + h6
        k = jnp.where(k >= 6.0, k - 6.0, k)           # (n + 6h) mod 6
        a = jnp.clip(jnp.minimum(k, 4.0 - k), 0.0, 1.0)
        o_ref[0, ch, :, :] = (maxc - cr * a).astype(o_ref.dtype)


def _strip_rows(rows: int, batch: int) -> int:
    """Pick a sublane strip size: >=4 total grid steps, multiple of 8 sublanes."""
    if rows <= 8:
        return rows                                   # full dim (satisfies (8,128))
    want_strips = max(pl.cdiv(4, batch), 1)           # batch also adds grid steps
    ts = pl.cdiv(rows, want_strips)
    ts = min(ts, _MAX_SUBLANE_ROWS)
    ts = pl.cdiv(ts, 8) * 8                           # round up to sublane multiple
    return ts


def adjust_hue(x: jax.Array, factor) -> jax.Array:
    """Pallas TPU adjust_hue for float RGB images, NCHW or CHW layout."""
    if not -0.5 <= float(factor) <= 0.5:
        raise ValueError(f"hue factor {factor} is not in [-0.5, 0.5]")
    squeeze = x.ndim == 3
    if squeeze:
        x = x[None]
    B, C, H, W = x.shape
    if C != 3:
        raise ValueError("adjust_hue expects 3 channels (RGB)")

    n_pix = H * W
    n_pad = pl.cdiv(n_pix, _LANE) * _LANE
    xf = x.reshape(B, C, n_pix)
    if n_pad != n_pix:
        # TODO(synk): handle the H*W % 128 tail with an in-kernel masked store
        # (prefetched n_pix scalar) instead of this extra HBM pad+slice pass.
        xf = jnp.pad(xf, ((0, 0), (0, 0), (0, n_pad - n_pix)))
    rows = n_pad // _LANE
    x4 = xf.reshape(B, C, rows, _LANE)                # lane-dense view; no copy
                                                      # when H*W % 128 == 0
    ts = _strip_rows(rows, B)
    grid = (B, pl.cdiv(rows, ts))

    factor_arr = jnp.asarray([factor], dtype=jnp.float32)

    out = pl.pallas_call(
        _hue_kernel,
        out_shape=jax.ShapeDtypeStruct((B, C, rows, _LANE), x.dtype),
        grid_spec=pltpu.PrefetchScalarGridSpec(
            num_scalar_prefetch=0,
            grid=grid,
            in_specs=[
                pl.BlockSpec(memory_space=pltpu.MemorySpace.SMEM),   # factor (1,)
                pl.BlockSpec((1, C, ts, _LANE), lambda bi, si: (bi, 0, si, 0)),
            ],
            out_specs=pl.BlockSpec((1, C, ts, _LANE),
                                   lambda bi, si: (bi, 0, si, 0)),
        ),
        compiler_params=pltpu.CompilerParams(
            dimension_semantics=("parallel", "parallel"),
        ),
    )(factor_arr, x4)

    out = out.reshape(B, C, n_pad)
    if n_pad != n_pix:
        out = out[:, :, :n_pix]
    out = out.reshape(B, C, H, W)
    if squeeze:
        out = out[0]
    return out


class HueJax:
    """JAX/Pallas port of the PyTorch `Hue` module (float images in [0, 1])."""
    # TODO(synk): torchvision's uint8 -> float -> uint8 dtype round-trip is not
    # reproduced; inputs are assumed to already be float images in [0, 1].

    def __init__(self, factor: float):
        self.factor = float(factor)

    def __call__(self, img_wm_device):
        # The PyTorch forward adjusts the hue of the first element of its arg.
        return adjust_hue(img_wm_device[0], self.factor)


def _adjust_hue_ref(x, factor):
    """Pure-JAX reference: torchvision float rgb2hsv / hsv2rgb (with divides)."""
    xf = x.astype(jnp.float32)
    r, g, b = xf[..., 0, :, :], xf[..., 1, :, :], xf[..., 2, :, :]
    maxc = jnp.maximum(jnp.maximum(r, g), b)
    minc = jnp.minimum(jnp.minimum(r, g), b)
    eqc = maxc == minc
    cr = maxc - minc
    ones = jnp.ones_like(maxc)
    s = cr / jnp.where(eqc, ones, maxc)
    cr_div = jnp.where(eqc, ones, cr)
    rc = (maxc - r) / cr_div
    gc = (maxc - g) / cr_div
    bc = (maxc - b) / cr_div
    hr = jnp.where(maxc == r, bc - gc, 0.0)
    hg = jnp.where((maxc == g) & (maxc != r), 2.0 + rc - bc, 0.0)
    hb = jnp.where((maxc != g) & (maxc != r), 4.0 + gc - rc, 0.0)
    h = (hr + hg + hb) / 6.0 + 1.0
    h = h - jnp.floor(h)
    h = h + jnp.float32(factor)
    h = h - jnp.floor(h)
    h6 = h * 6.0
    i = jnp.floor(h6)
    f = h6 - i
    i = jnp.where(i >= 6.0, i - 6.0, i)
    v = maxc
    p = jnp.clip(v * (1.0 - s), 0.0, 1.0)
    q = jnp.clip(v * (1.0 - s * f), 0.0, 1.0)
    t = jnp.clip(v * (1.0 - s * (1.0 - f)), 0.0, 1.0)

    def sel(c0, c1, c2, c3, c4, c5):
        return jnp.where(i == 0.0, c0,
               jnp.where(i == 1.0, c1,
               jnp.where(i == 2.0, c2,
               jnp.where(i == 3.0, c3,
               jnp.where(i == 4.0, c4, c5)))))

    r_o = sel(v, q, p, p, t, v)
    g_o = sel(t, v, v, q, p, p)
    b_o = sel(p, p, t, v, v, q)
    return jnp.stack([r_o, g_o, b_o], axis=-3).astype(x.dtype)


if __name__ == "__main__":
    key = jax.random.PRNGKey(0)

    # Main case: NCHW batch, H*W a multiple of 128 (no padding path).
    B, C, H, W = 2, 3, 16, 16
    x = jax.random.uniform(key, (B, C, H, W), dtype=jnp.float32)
    hue = HueJax(factor=0.25)
    out = jax.block_until_ready(hue((x,)))           # forward indexes [0] of its arg
    assert out.shape == (B, C, H, W) and out.dtype == x.dtype
    ref = _adjust_hue_ref(x, 0.25)
    # Tolerance covers the EUP reciprocal (+Newton) and the algebraically
    # equivalent (but re-ordered) HSV->RGB form; values are in [0, 1].
    np.testing.assert_allclose(np.asarray(out), np.asarray(ref),
                               rtol=1e-4, atol=1e-4)

    # Secondary case: CHW layout, odd spatial size (exercises pad + slice),
    # negative hue factor.
    x2 = jax.random.uniform(jax.random.PRNGKey(1), (3, 13, 21), dtype=jnp.float32)
    out2 = jax.block_until_ready(adjust_hue(x2, -0.3))
    assert out2.shape == x2.shape
    ref2 = _adjust_hue_ref(x2, -0.3)
    np.testing.assert_allclose(np.asarray(out2), np.asarray(ref2),
                               rtol=1e-4, atol=1e-4)

    print("KERNEL_OK")
</pallas_src>

<mosaic_0001>
module attributes {stable_mosaic.version = 11 : i64} {
  func.func @_hue_kernel(%arg0: i32, %arg1: i32, %arg2: memref<1xf32, #tpu.memory_space<smem>>, %arg3: memref<1x3x2x128xf32, #tpu.memory_space<vmem>>, %arg4: memref<1x3x2x128xf32, #tpu.memory_space<vmem>>) attributes {dimension_semantics = [#tpu.dimension_semantics<parallel>, #tpu.dimension_semantics<parallel>], iteration_bounds = array<i64: 2, 1>, scalar_prefetch = 0 : i64, scratch_operands = 0 : i64, tpu.core_type = #tpu.core_type<tc>, window_params = [{transform_indices = @transform_0, window_bounds = array<i64: 1>}, {transform_indices = @transform_1, window_bounds = array<i64: 1, 3, 2, 128>}, {transform_indices = @transform_2, window_bounds = array<i64: 1, 3, 2, 128>}]} {
    %c0 = arith.constant 0 : index
    %0 = memref.load %arg2[%c0] : memref<1xf32, #tpu.memory_space<smem>>
    %c0_0 = arith.constant 0 : index
    %c0_1 = arith.constant 0 : index
    %c0_2 = arith.constant 0 : index
    %c0_3 = arith.constant 0 : index
    %1 = vector.load %arg3[%c0_0, %c0_1, %c0_2, %c0_3] : memref<1x3x2x128xf32, #tpu.memory_space<vmem>>, vector<1x1x2x128xf32>
    %2 = vector.shape_cast %1 : vector<1x1x2x128xf32> to vector<2x128xf32>
    %c0_4 = arith.constant 0 : index
    %c1 = arith.constant 1 : index
    %c0_5 = arith.constant 0 : index
    %c0_6 = arith.constant 0 : index
    %3 = vector.load %arg3[%c0_4, %c1, %c0_5, %c0_6] : memref<1x3x2x128xf32, #tpu.memory_space<vmem>>, vector<1x1x2x128xf32>
    %4 = vector.shape_cast %3 : vector<1x1x2x128xf32> to vector<2x128xf32>
    %c0_7 = arith.constant 0 : index
    %c2 = arith.constant 2 : index
    %c0_8 = arith.constant 0 : index
    %c0_9 = arith.constant 0 : index
    %5 = vector.load %arg3[%c0_7, %c2, %c0_8, %c0_9] : memref<1x3x2x128xf32, #tpu.memory_space<vmem>>, vector<1x1x2x128xf32>
    %6 = vector.shape_cast %5 : vector<1x1x2x128xf32> to vector<2x128xf32>
    %7 = arith.maximumf %2, %4 : vector<2x128xf32>
    %8 = arith.maximumf %7, %6 : vector<2x128xf32>
    %9 = arith.minimumf %2, %4 : vector<2x128xf32>
    %10 = arith.minimumf %9, %6 : vector<2x128xf32>
    %11 = arith.subf %8, %10 : vector<2x128xf32>
    %12 = arith.cmpf oeq, %8, %10 : vector<2x128xf32>
    %cst = arith.constant 1.000000e+00 : f32
    %13 = vector.broadcast %cst : f32 to vector<2x128xf32>
    %14 = arith.select %12, %13, %11 : vector<2x128xi1>, vector<2x128xf32>
    %15 = tpu.reciprocal %14 {approx = true} : vector<2x128xf32> -> vector<2x128xf32>
    %16 = arith.mulf %14, %15 : vector<2x128xf32>
    %cst_10 = arith.constant 2.000000e+00 : f32
    %17 = vector.broadcast %cst_10 : f32 to vector<2x128xf32>
    %18 = arith.subf %17, %16 : vector<2x128xf32>
    %19 = arith.mulf %15, %18 : vector<2x128xf32>
    %20 = arith.mulf %14, %19 : vector<2x128xf32>
    %cst_11 = arith.constant 2.000000e+00 : f32
    %21 = vector.broadcast %cst_11 : f32 to vector<2x128xf32>
    %22 = arith.subf %21, %20 : vector<2x128xf32>
    %23 = arith.mulf %19, %22 : vector<2x128xf32>
    %24 = arith.cmpf oeq, %8, %2 : vector<2x128xf32>
    %25 = arith.cmpf oeq, %8, %4 : vector<2x128xf32>
    %26 = arith.subf %4, %6 : vector<2x128xf32>
    %27 = arith.mulf %26, %23 : vector<2x128xf32>
    %28 = arith.subf %6, %2 : vector<2x128xf32>
    %29 = arith.mulf %28, %23 : vector<2x128xf32>
    %cst_12 = arith.constant 2.000000e+00 : f32
    %30 = vector.broadcast %cst_12 : f32 to vector<2x128xf32>
    %31 = arith.addf %30, %29 : vector<2x128xf32>
    %32 = arith.subf %2, %4 : vector<2x128xf32>
    %33 = arith.mulf %32, %23 : vector<2x128xf32>
    %cst_13 = arith.constant 4.000000e+00 : f32
    %34 = vector.broadcast %cst_13 : f32 to vector<2x128xf32>
    %35 = arith.addf %34, %33 : vector<2x128xf32>
    %36 = arith.select %25, %31, %35 : vector<2x128xi1>, vector<2x128xf32>
    %37 = arith.select %24, %27, %36 : vector<2x128xi1>, vector<2x128xf32>
    %cst_14 = arith.constant 0.166666672 : f32
    %38 = vector.broadcast %cst_14 : f32 to vector<2x128xf32>
    %39 = arith.mulf %37, %38 : vector<2x128xf32>
    %cst_15 = arith.constant 1.000000e+00 : f32
    %40 = vector.broadcast %cst_15 : f32 to vector<2x128xf32>
    %41 = arith.addf %39, %40 : vector<2x128xf32>
    %42 = math.floor %41 : vector<2x128xf32>
    %43 = arith.subf %41, %42 : vector<2x128xf32>
    %44 = vector.broadcast %0 : f32 to vector<2x128xf32>
    %45 = arith.addf %43, %44 : vector<2x128xf32>
    %46 = math.floor %45 : vector<2x128xf32>
    %47 = arith.subf %45, %46 : vector<2x128xf32>
    %cst_16 = arith.constant 6.000000e+00 : f32
    %48 = vector.broadcast %cst_16 : f32 to vector<2x128xf32>
    %49 = arith.mulf %47, %48 : vector<2x128xf32>
    %cst_17 = arith.constant 5.000000e+00 : f32
    %50 = vector.broadcast %cst_17 : f32 to vector<2x128xf32>
    %51 = arith.addf %50, %49 : vector<2x128xf32>
    %cst_18 = arith.constant 6.000000e+00 : f32
    %52 = vector.broadcast %cst_18 : f32 to vector<2x128xf32>
    %53 = arith.cmpf oge, %51, %52 : vector<2x128xf32>
    %cst_19 = arith.constant 6.000000e+00 : f32
    %54 = vector.broadcast %cst_19 : f32 to vector<2x128xf32>
    %55 = arith.subf %51, %54 : vector<2x128xf32>
    %56 = arith.select %53, %55, %51 : vector<2x128xi1>, vector<2x128xf32>
    %cst_20 = arith.constant 4.000000e+00 : f32
    %57 = vector.broadcast %cst_20 : f32 to vector<2x128xf32>
    %58 = arith.subf %57, %56 : vector<2x128xf32>
    %59 = arith.minimumf %56, %58 : vector<2x128xf32>
    %cst_21 = arith.constant 0.000000e+00 : f32
    %cst_22 = arith.constant 1.000000e+00 : f32
    %60 = vector.broadcast %cst_21 : f32 to vector<2x128xf32>
    %61 = arith.maximumf %60, %59 : vector<2x128xf32>
    %62 = vector.broadcast %cst_22 : f32 to vector<2x128xf32>
    %63 = arith.minimumf %62, %61 : vector<2x128xf32>
    %64 = arith.mulf %11, %63 : vector<2x128xf32>
    %65 = arith.subf %8, %64 : vector<2x128xf32>
    %c0_23 = arith.constant 0 : index
    %c0_24 = arith.constant 0 : index
    %c0_25 = arith.constant 0 : index
    %c0_26 = arith.constant 0 : index
    %66 = vector.load %arg4[%c0_23, %c0_24, %c0_25, %c0_26] : memref<1x3x2x128xf32, #tpu.memory_space<vmem>>, vector<1x1x2x128xf32>
    %67 = vector.shape_cast %66 : vector<1x1x2x128xf32> to vector<2x128xf32>
    %68 = vector.shape_cast %65 : vector<2x128xf32> to vector<1x1x2x128xf32>
    tpu.vector_store %arg4[%c0_23, %c0_24, %c0_25, %c0_26], %68 {strides = array<i32>} : memref<1x3x2x128xf32, #tpu.memory_space<vmem>>, vector<1x1x2x128xf32>,
    %cst_27 = arith.constant 3.000000e+00 : f32
    %69 = vector.broadcast %cst_27 : f32 to vector<2x128xf32>
    %70 = arith.addf %69, %49 : vector<2x128xf32>
    %cst_28 = arith.constant 6.000000e+00 : f32
    %71 = vector.broadcast %cst_28 : f32 to vector<2x128xf32>
    %72 = arith.cmpf oge, %70, %71 : vector<2x128xf32>
    %cst_29 = arith.constant 6.000000e+00 : f32
    %73 = vector.broadcast %cst_29 : f32 to vector<2x128xf32>
    %74 = arith.subf %70, %73 : vector<2x128xf32>
    %75 = arith.select %72, %74, %70 : vector<2x128xi1>, vector<2x128xf32>
    %cst_30 = arith.constant 4.000000e+00 : f32
    %76 = vector.broadcast %cst_30 : f32 to vector<2x128xf32>
    %77 = arith.subf %76, %75 : vector<2x128xf32>
    %78 = arith.minimumf %75, %77 : vector<2x128xf32>
    %cst_31 = arith.constant 0.000000e+00 : f32
    %cst_32 = arith.constant 1.000000e+00 : f32
    %79 = vector.broadcast %cst_31 : f32 to vector<2x128xf32>
    %80 = arith.maximumf %79, %78 : vector<2x128xf32>
    %81 = vector.broadcast %cst_32 : f32 to vector<2x128xf32>
    %82 = arith.minimumf %81, %80 : vector<2x128xf32>
    %83 = arith.mulf %11, %82 : vector<2x128xf32>
    %84 = arith.subf %8, %83 : vector<2x128xf32>
    %c0_33 = arith.constant 0 : index
    %c1_34 = arith.constant 1 : index
    %c0_35 = arith.constant 0 : index
    %c0_36 = arith.constant 0 : index
    %85 = vector.load %arg4[%c0_33, %c1_34, %c0_35, %c0_36] : memref<1x3x2x128xf32, #tpu.memory_space<vmem>>, vector<1x1x2x128xf32>
    %86 = vector.shape_cast %85 : vector<1x1x2x128xf32> to vector<2x128xf32>
    %87 = vector.shape_cast %84 : vector<2x128xf32> to vector<1x1x2x128xf32>
    tpu.vector_store %arg4[%c0_33, %c1_34, %c0_35, %c0_36], %87 {strides = array<i32>} : memref<1x3x2x128xf32, #tpu.memory_space<vmem>>, vector<1x1x2x128xf32>,
    %cst_37 = arith.constant 1.000000e+00 : f32
    %88 = vector.broadcast %cst_37 : f32 to vector<2x128xf32>
    %89 = arith.addf %88, %49 : vector<2x128xf32>
    %cst_38 = arith.constant 6.000000e+00 : f32
    %90 = vector.broadcast %cst_38 : f32 to vector<2x128xf32>
    %91 = arith.cmpf oge, %89, %90 : vector<2x128xf32>
    %cst_39 = arith.constant 6.000000e+00 : f32
    %92 = vector.broadcast %cst_39 : f32 to vector<2x128xf32>
    %93 = arith.subf %89, %92 : vector<2x128xf32>
    %94 = arith.select %91, %93, %89 : vector<2x128xi1>, vector<2x128xf32>
    %cst_40 = arith.constant 4.000000e+00 : f32
    %95 = vector.broadcast %cst_40 : f32 to vector<2x128xf32>
    %96 = arith.subf %95, %94 : vector<2x128xf32>
    %97 = arith.minimumf %94, %96 : vector<2x128xf32>
    %cst_41 = arith.constant 0.000000e+00 : f32
    %cst_42 = arith.constant 1.000000e+00 : f32
    %98 = vector.broadcast %cst_41 : f32 to vector<2x128xf32>
    %99 = arith.maximumf %98, %97 : vector<2x128xf32>
    %100 = vector.broadcast %cst_42 : f32 to vector<2x128xf32>
    %101 = arith.minimumf %100, %99 : vector<2x128xf32>
    %102 = arith.mulf %11, %101 : vector<2x128xf32>
    %103 = arith.subf %8, %102 : vector<2x128xf32>
    %c0_43 = arith.constant 0 : index
    %c2_44 = arith.constant 2 : index
    %c0_45 = arith.constant 0 : index
    %c0_46 = arith.constant 0 : index
    %104 = vector.load %arg4[%c0_43, %c2_44, %c0_45, %c0_46] : memref<1x3x2x128xf32, #tpu.memory_space<vmem>>, vector<1x1x2x128xf32>
    %105 = vector.shape_cast %104 : vector<1x1x2x128xf32> to vector<2x128xf32>
    %106 = vector.shape_cast %103 : vector<2x128xf32> to vector<1x1x2x128xf32>
    tpu.vector_store %arg4[%c0_43, %c2_44, %c0_45, %c0_46], %106 {strides = array<i32>} : memref<1x3x2x128xf32, #tpu.memory_space<vmem>>, vector<1x1x2x128xf32>,
    return
  }
  func.func @transform_0(%arg0: i32, %arg1: i32) -> i32 {
    %c0_i32 = arith.constant 0 : i32
    %c0_i32_0 = arith.constant 0 : i32
    return %c0_i32 : i32
  }
  func.func @transform_1(%arg0: i32, %arg1: i32) -> (i32, i32, i32, i32) {
    %c0_i32 = arith.constant 0 : i32
    %c0_i32_0 = arith.constant 0 : i32
    %c0_i32_1 = arith.constant 0 : i32
    return %arg0, %c0_i32, %arg1, %c0_i32_0 : i32, i32, i32, i32
  }
  func.func @transform_2(%arg0: i32, %arg1: i32) -> (i32, i32, i32, i32) {
    %c0_i32 = arith.constant 0 : i32
    %c0_i32_0 = arith.constant 0 : i32
    %c0_i32_1 = arith.constant 0 : i32
    return %arg0, %c0_i32, %arg1, %c0_i32_0 : i32, i32, i32, i32
  }
}

</mosaic_0001>

<llo_original>
// kernel: tpu_custom_call.1
$region0: #{tpu_custom_call.1}
  #allocation0 [shape = 'u32[]', space=smem, size = 0x4, offset = 0x4, fixed_abs, tag = 'smem constant byte address 0x4 - core index']
  #allocation1 [shape = 'u32[72,128]{1,0:T(1,128)}', space=vmem, size = 0x9000, scoped, tag = 'internal scratch']
  #allocation2 [shape = 'f32[1]{0:T(128)S(6)}', space=smem, size = 0x200, scoped, tag = 'scoped memory for tpu_custom_call.1']
  %s0 = inlined_call_operand.<no memory space> [shape: f32[1], index: 0, kind: input, shape index: {}]
  %s1 = inlined_call_operand.hbm [shape: f32[2,3,2,128], index: 1, kind: input, shape index: {}]
  %s2 = inlined_call_operand.hbm [shape: f32[2,3,2,128], index: 2, kind: output, shape index: {}]
  %s3 = sld [smem:[#allocation0]]
  $region45: #{tpu_custom_call.1} parent=0
    _
  %s5 = ssub.s32 1, %s3
  %s6 = scalar_select 0, %s5, %s3
  %7 = sst [smem:[#allocation2]] %s0
  $region1: #{tpu_custom_call.1} parent=0
    #allocation3 [shape = 'u8[6144]{0}', space=vmem, size = 0x1800, scoped, tag = 'input window, operand 1']
    #allocation4 [shape = 's32[2]{0}', space=sflag, size = 0x8, scoped, tag = 'scoped memory for tpu_custom_call.1']
    #allocation5 [shape = 's32[2]{0}', space=sflag, size = 0x8, scoped, tag = 'scoped memory for tpu_custom_call.1']
    #allocation6 [shape = 'u8[6144]{0}', space=vmem, size = 0x1800, scoped, tag = 'output window, operand 0']
    %8 = vsyncpa [#allocation4], 0
    %s9 = scalar_lea.sflag [#allocation4], 1
    %10 = vsyncpa %s9, 0
    %11 = vsyncpa [#allocation5], 0
    %s12 = scalar_lea.sflag [#allocation5], 1
    %13 = vsyncpa %s12, 0
    loop: start=0, step=1, limit=4
    $region2: #{tpu_custom_call.1} parent=1 // loop_pre_header
      _
    $region3: #{tpu_custom_call.1} parent=1 // loop_header
      %s15 = sphi 0, %s19
      %p16 = scmp.ge.s32.totalorder %s15, 4
      %s22 = sphi 0, %s34
      %s23 = sphi 0, %s30
      %s24 = sphi 0, %s22
      %s25 = sphi 0, %s23
      %s26 = sphi 0, %s24
      %s27 = sphi 0, %s25
      %s35 = sphi 0, %s35
      %s37 = sphi 0, %s35
      %s38 = sphi 0, %s37
      %s52 = sphi 0, %s38
      %s60 = sphi 0, %s62
      %s63 = sphi 0, %s60
      %s64 = sphi 0, %s63
      %s80 = sphi 0, %s64
      %s88 = sphi 0, %s90
      %s91 = sphi 0, %s88
      %s92 = sphi 0, %s91
      %s108 = sphi 0, %s92
    $region4: #{tpu_custom_call.1} parent=1 // loop_header_branch
      %18 = sbr.rel (%p16) target = $region8
    $region5: #{tpu_custom_call.1} parent=1 // loop_body
      %s20 = ssub.s32 %s15, 1
      %s21 = ssub.s32 %s15, 2
      %s28 = sadd.s32 1, %s23
      %p29 = scmp.ge.s32.totalorder %s28, 1
      %s30 = scalar_select %p29, 0, %s28
      %s31 = sadd.s32 1, %s22
      %s32 = scalar_select %p29, %s31, %s22
      %p33 = scmp.ge.s32.totalorder %s32, 2
      %s34 = scalar_select %p33, 0, %s32
      %s36 = sadd.s32 %s35, 1
      %p39 = scmp.eq.s32.totalorder %s15, 1
      %p40 = scmp.ne.s32.totalorder %s35, %s37
      %p41 = scmp.eq.s32.totalorder %s15, 0
      %p42 = por %p40, %p41
      %p43 = scmp.ne.s32.totalorder %s35, %s37
      %p44 = scmp.eq.s32.totalorder %s20, 1
      %p45 = por %p43, %p44
      %p46 = scmp.ne.s32.totalorder %s37, %s38
      %p47 = scmp.eq.s32.totalorder %s20, 0
      %p48 = por %p46, %p47
      %p49 = scmp.ne.s32.totalorder %s37, %s38
      %p50 = scmp.eq.s32.totalorder %s21, 1
      %p51 = por %p49, %p50
      %p53 = scmp.ne.s32.totalorder %s38, %s52
      %p54 = scmp.eq.s32.totalorder %s21, 0
      %p55 = por %p53, %p54
      %s56 = ssub.s32 %s22, %s34
      %s57 = ssub.s32 %s23, %s30
      %s58 = sor.u32 %s56, %s57
      %p59 = scmp.eq.s32.totalorder %s58, 0
      %s61 = sadd.s32 %s60, 1
      %s62 = scalar_select %p59, %s60, %s61
      %p65 = pneg %p59
      %p66 = scmp.eq.s32.totalorder %s15, 1
      %p67 = por %p65, %p66
      %p68 = scmp.ne.s32.totalorder %s60, %s63
      %p69 = scmp.eq.s32.totalorder %s15, 0
      %p70 = por %p68, %p69
      %p71 = scmp.ne.s32.totalorder %s60, %s63
      %p72 = scmp.eq.s32.totalorder %s20, 1
      %p73 = por %p71, %p72
      %p74 = scmp.ne.s32.totalorder %s63, %s64
      %p75 = scmp.eq.s32.totalorder %s20, 0
      %p76 = por %p74, %p75
      %p77 = scmp.ne.s32.totalorder %s63, %s64
      %p78 = scmp.eq.s32.totalorder %s21, 1
      %p79 = por %p77, %p78
      %p81 = scmp.ne.s32.totalorder %s64, %s80
      %p82 = scmp.eq.s32.totalorder %s21, 0
      %p83 = por %p81, %p82
      %s84 = ssub.s32 %s22, %s34
      %s85 = ssub.s32 %s23, %s30
      %s86 = sor.u32 %s84, %s85
      %p87 = scmp.eq.s32.totalorder %s86, 0
      %s89 = sadd.s32 %s88, 1
      %s90 = scalar_select %p87, %s88, %s89
      %p93 = pneg %p87
      %p94 = scmp.eq.s32.totalorder %s15, 1
      %p95 = por %p93, %p94
      %p96 = scmp.ne.s32.totalorder %s88, %s91
      %p97 = scmp.eq.s32.totalorder %s15, 0
      %p98 = por %p96, %p97
      %p99 = scmp.ne.s32.totalorder %s88, %s91
      %p100 = scmp.eq.s32.totalorder %s20, 1
      %p101 = por %p99, %p100
      %p102 = scmp.ne.s32.totalorder %s91, %s92
      %p103 = scmp.eq.s32.totalorder %s20, 0
      %p104 = por %p102, %p103
      %p105 = scmp.ne.s32.totalorder %s91, %s92
      %p106 = scmp.eq.s32.totalorder %s21, 1
      %p107 = por %p105, %p106
      %p109 = scmp.ne.s32.totalorder %s92, %s108
      %p110 = scmp.eq.s32.totalorder %s21, 0
      %p111 = por %p109, %p110
      %p112 = scmp.le.s32.totalorder 1, %s15
      %p113 = scmp.lt.s32.totalorder %s15, 3
      %p114 = pnand %p112, %p113
      %p115 = pneg %p114
      // Predicated region
      $region9: #{tpu_custom_call.1} parent=5 // pred_check
        _
      $region10: #{tpu_custom_call.1} parent=5 // pred_check_branch
        %117 = sbr.rel (%p114) target = $region12
      $region11: #{tpu_custom_call.1} parent=5 // pred_region
        %s118 = ssub.s32 %s15, 1
        // Predicated region
        $region13: #{tpu_custom_call.1} parent=11 // pred_check
          %p119 = pneg %p48
        $region14: #{tpu_custom_call.1} parent=11 // pred_check_branch
          %121 = sbr.rel (%p119) target = $region16
        $region15: #{tpu_custom_call.1} parent=11 // pred_region
          _
        $region16: #{tpu_custom_call.1} parent=11 // pred_fallthru
          _
      $region12: #{tpu_custom_call.1} parent=5 // pred_fallthru
        _
      %p122 = scmp.lt.s32.totalorder %s15, 2
      // Predicated region
      $region17: #{tpu_custom_call.1} parent=5 // pred_check
        %p123 = pneg %p122
      $region18: #{tpu_custom_call.1} parent=5 // pred_check_branch
        %125 = sbr.rel (%p123) target = $region20
      $region19: #{tpu_custom_call.1} parent=5 // pred_region
        // Predicated region
        $region21: #{tpu_custom_call.1} parent=19 // pred_check
          %p126 = pneg %p70
        $region22: #{tpu_custom_call.1} parent=19 // pred_check_branch
          %128 = sbr.rel (%p126) target = $region24
        $region23: #{tpu_custom_call.1} parent=19 // pred_region
          %s129 = sand.u32 %s60, 1
          %s130 = scalar_lea.sflag [#allocation4], %s129
          %s131 = sand.u32 %s60, 1
          %s132 = smul.addr %s131, 6
          %s133 = scalar_lea.vmem [#allocation3], %s132
          %135 = vsyncadd %s130, 0
          %s136 = smul.addr %s22, 3
          %s137 = sadd.s32 %s23, %s136
          %s138 = smul.addr %s137, 2
          %s139 = scalar_lea.hbm %s1, %s138
          %s140 = sshll.u32 %s139, 4
          %s141 = int_to_ptr.hbm [resolvable:$true] %s140
          %s142 = sshll.u32 %s133, 4
          %s143 = int_to_ptr.vmem [resolvable:$true] %s142
          %148 = dma.hbm_to_vmem [thread:$0]  %s141, 96, %s143, %s130, 32, 32, 2
        $region24: #{tpu_custom_call.1} parent=19 // pred_fallthru
          _
      $region20: #{tpu_custom_call.1} parent=5 // pred_fallthru
        _
      %p149 = scmp.le.s32.totalorder 1, %s15
      %p150 = scmp.lt.s32.totalorder %s15, 3
      %p151 = pnand %p149, %p150
      %p152 = pneg %p151
      // Predicated region
      $region25: #{tpu_custom_call.1} parent=5 // pred_check
        _
      $region26: #{tpu_custom_call.1} parent=5 // pred_check_branch
        %154 = sbr.rel (%p151) target = $region28
      $region27: #{tpu_custom_call.1} parent=5 // pred_region
        %s155 = ssub.s32 %s15, 1
        %s156 = sand.u32 %s63, 1
        %s157 = scalar_lea.sflag [#allocation4], %s156
        %s158 = sand.u32 %s63, 1
        %s159 = smul.addr %s158, 6
        %s160 = scalar_lea.vmem [#allocation3], %s159
        // Predicated region
        $region29: #{tpu_custom_call.1} parent=27 // pred_check
          %p161 = pneg %p76
        $region30: #{tpu_custom_call.1} parent=27 // pred_check_branch
          %163 = sbr.rel (%p161) target = $region32
        $region31: #{tpu_custom_call.1} parent=27 // pred_region
          %165 = dma.done %s157, 96
        $region32: #{tpu_custom_call.1} parent=27 // pred_fallthru
          _
        %p166 = pneg %p48
        %p167 = pneg %p45
        %s168 = sand.u32 %s63, 1
        %s169 = scalar_lea.sflag [#allocation4], %s168
        %s170 = sand.u32 %s63, 1
        %s171 = smul.addr %s170, 6
        %s172 = scalar_lea.vmem [#allocation3], %s171
        %p173 = pneg %p76
        %p174 = pneg %p73
        %p175 = pneg %p104
        %p176 = pneg %p101
        %s177 = sand.u32 %s91, 1
        %s178 = scalar_lea.sflag [#allocation5], %s177
        %s179 = sand.u32 %s91, 1
        %s180 = smul.addr %s179, 6
        %s181 = scalar_lea.vmem [#allocation6], %s180
        %s182 = sld [smem:[#allocation2]]
        %v183 = vld [vmem:[%s160] sm:$0x3]
        %s184 = scalar_lea.vmem %s160, 2 [#allocation3]
        %v185 = vld [vmem:[%s184] sm:$0x3]
        %s186 = scalar_lea.vmem %s160, 4 [#allocation3]
        %v187 = vld [vmem:[%s186] sm:$0x3]
        %v188 = vmax.f32 %v183, %v185
        %v189 = vmax.f32 %v188, %v187
        %v190 = vmin.f32 %v183, %v185
        %v191 = vmin.f32 %v190, %v187
        %v192 = vsub.f32 %v189, %v191
        %vm193 = vcmp.eq.f32.partialorder %v189, %v191
        %v194 = vsel %vm193, 1.0, %v192
        %v195 = vrcp.pop %v194
        %v196 = vmul.f32 %v194, %v195
        %v197 = vsub.f32 2.0, %v196
        %v198 = vmul.f32 %v195, %v197
        %v199 = vmul.f32 %v194, %v198
        %v200 = vsub.f32 2.0, %v199
        %v201 = vmul.f32 %v198, %v200
        %vm202 = vcmp.eq.f32.partialorder %v189, %v183
        %vm203 = vcmp.eq.f32.partialorder %v189, %v185
        %v204 = vsub.f32 %v185, %v187
        %v205 = vmul.f32 %v204, %v201
        %v206 = vsub.f32 %v187, %v183
        %v207 = vmul.f32 %v206, %v201
        %v208 = vadd.f32 %v207, 2.0
        %v209 = vsub.f32 %v183, %v185
        %v210 = vmul.f32 %v209, %v201
        %v211 = vadd.f32 %v210, 4.0
        %v212 = vsel %vm203, %v208, %v211
        %v213 = vsel %vm202, %v205, %v212
        %v214 = vmul.f32 %v213, 0.16666667
        %v215 = vadd.f32 %v214, 1.0
        %v216 = vfloor.f32 %v215
        %v217 = vsub.f32 %v215, %v216
        %v218 = vstv %s182
        %v219 = vadd.f32 %v217, %v218
        %v220 = vfloor.f32 %v219
        %v221 = vsub.f32 %v219, %v220
        %v222 = vmul.f32 %v221, 6.0
        %v223 = vadd.f32 %v222, 5.0
        %vm224 = vcmp.ge.f32.partialorder %v223, 6.0
        %v225 = vsub.f32 %v223, 6.0
        %v226 = vsel %vm224, %v225, %v223
        %v227 = vsub.f32 4.0, %v226
        %v228 = vmin.f32 %v226, %v227
        %v229 = vmax.f32 %v228, 0.0
        %v230 = vmin.f32 %v229, 1.0
        %v231 = vmul.f32 %v192, %v230
        %v232 = vsub.f32 %v189, %v231
        %233 = vst [vmem:[%s181] sm:$0x3] %v232
        %v234 = vadd.f32 %v222, 3.0
        %vm235 = vcmp.ge.f32.partialorder %v234, 6.0
        %v236 = vsub.f32 %v234, 6.0
        %v237 = vsel %vm235, %v236, %v234
        %v238 = vsub.f32 4.0, %v237
        %v239 = vmin.f32 %v237, %v238
        %v240 = vmax.f32 %v239, 0.0
        %v241 = vmin.f32 %v240, 1.0
        %v242 = vmul.f32 %v192, %v241
        %v243 = vsub.f32 %v189, %v242
        %s244 = scalar_lea.vmem %s181, 2 [#allocation6]
        %245 = vst [vmem:[%s244] sm:$0x3] %v243
        %v246 = vadd.f32 %v222, 1.0
        %vm247 = vcmp.ge.f32.partialorder %v246, 6.0
        %v248 = vsub.f32 %v246, 6.0
        %v249 = vsel %vm247, %v248, %v246
        %v250 = vsub.f32 4.0, %v249
        %v251 = vmin.f32 %v249, %v250
        %v252 = vmax.f32 %v251, 0.0
        %v253 = vmin.f32 %v252, 1.0
        %v254 = vmul.f32 %v192, %v253
        %v255 = vsub.f32 %v189, %v254
        %s256 = scalar_lea.vmem %s181, 4 [#allocation6]
        %257 = vst [vmem:[%s256] sm:$0x3] %v255
        %s258 = sand.u32 %s91, 1
        %s259 = scalar_lea.sflag [#allocation5], %s258
        %s260 = sand.u32 %s91, 1
        %s261 = smul.addr %s260, 6
        %s262 = scalar_lea.vmem [#allocation6], %s261
        // Predicated region
        $region33: #{tpu_custom_call.1} parent=27 // pred_check
          %p263 = pneg %p101
        $region34: #{tpu_custom_call.1} parent=27 // pred_check_branch
          %265 = sbr.rel (%p263) target = $region36
        $region35: #{tpu_custom_call.1} parent=27 // pred_region
          %267 = vsyncadd %s259, 0
          %s268 = smul.addr %s24, 3
          %s269 = sadd.s32 %s25, %s268
          %s270 = smul.addr %s269, 2
          %s271 = scalar_lea.hbm %s2, %s270
          %s272 = sshll.u32 %s262, 4
          %s273 = int_to_ptr.vmem [resolvable:$true] %s272
          %s274 = sshll.u32 %s271, 4
          %s275 = int_to_ptr.hbm [resolvable:$true] %s274
          %280 = dma.vmem_to_hbm [thread:$0]  %s273, 96, %s275, %s259, 32, 32, 2
        $region36: #{tpu_custom_call.1} parent=27 // pred_fallthru
          _
      $region28: #{tpu_custom_call.1} parent=5 // pred_fallthru
        _
      %p281 = scmp.le.s32.totalorder 2, %s15
      // Predicated region
      $region37: #{tpu_custom_call.1} parent=5 // pred_check
        %p282 = pneg %p281
      $region38: #{tpu_custom_call.1} parent=5 // pred_check_branch
        %284 = sbr.rel (%p282) target = $region40
      $region39: #{tpu_custom_call.1} parent=5 // pred_region
        %s285 = ssub.s32 %s15, 2
        // Predicated region
        $region41: #{tpu_custom_call.1} parent=39 // pred_check
          %p286 = pneg %p107
        $region42: #{tpu_custom_call.1} parent=39 // pred_check_branch
          %288 = sbr.rel (%p286) target = $region44
        $region43: #{tpu_custom_call.1} parent=39 // pred_region
          %s289 = sand.u32 %s92, 1
          %s290 = scalar_lea.sflag [#allocation5], %s289
          %s291 = sand.u32 %s92, 1
          %s292 = smul.addr %s291, 6
          %s293 = scalar_lea.vmem [#allocation6], %s292
          %295 = dma.done %s290, 96
        $region44: #{tpu_custom_call.1} parent=39 // pred_fallthru
          _
      $region40: #{tpu_custom_call.1} parent=5 // pred_fallthru
        _
    $region6: #{tpu_custom_call.1} parent=1 // loop_footer
      %s19 = sadd.s32 1, %s15
    $region7: #{tpu_custom_call.1} parent=1 // loop_footer_branch
      %14 = sbr.rel target = $region3
    $region8: #{tpu_custom_call.1} parent=1 // loop_exit
      _
    %296 = vsyncpa [#allocation4], 1
    %s297 = scalar_lea.sflag [#allocation4], 1
    %298 = vsyncpa %s297, 1
    %299 = vsyncpa [#allocation5], 1
    %s300 = scalar_lea.sflag [#allocation5], 1
    %301 = vsyncpa %s300, 1

</llo_original>
